<compile_context>
chip_gen: v5e
topology: v5e:2x2
jax: 0.10.0
libtpu: 0.0.40
codegen_flags: <defaults>
</compile_context>

<pallas_src>
import math

import jax
import jax.numpy as jnp
from jax import lax
from jax.experimental import pallas as pl
from jax.experimental.pallas import tpu as pltpu

EPS = 1e-8
LOG2 = 0.6931471805599453

_LANE_TARGET = 256        # vector-path lane width target: wide enough for efficient
                          # DMA/stores, small enough that the 2 group-sum matmuls
                          # (2*L MAC/elem) stay far below HBM time/elem on v5e
_LANE_FLOOR = 128         # try not to drop below this many lanes (DMA granularity)
_TARGET_STEPS = 8         # >= 2 pipelined steps per TensorCore on v7x (2 TCs)
_SCALAR_COLS_MAX = 8192   # l=0 path: big lane width -> unmasked stores


def _round_up(n, m):
    return ((n + m - 1) // m) * m


def _largest_divisor_leq(n, cap):
    cap = max(1, min(int(cap), int(n)))
    for d in range(cap, 0, -1):
        if n % d == 0:
            return d
    return 1


def _vmem_budgets():
    """Per-generation VMEM sizing (v5e/v6e: 128 MiB physical, v7x: 64 MiB)."""
    try:
        info = pltpu.get_tpu_info()
        cap = int(getattr(info, "vmem_capacity_bytes", 64 * 1024 * 1024))
    except Exception:  # query unavailable: assume the smallest (v7x) capacity
        cap = 64 * 1024 * 1024
    max_block_bytes = cap // 64                    # ~1 MiB (v7x) / ~2 MiB (v5e/v6e) per block
    vmem_limit = min(cap // 2, 48 * 1024 * 1024)   # 32 MiB on v7x, 48 MiB on v5e/v6e
    return max_block_bytes, vmem_limit


def _pick_row_tile(rows, bytes_per_row, max_block_bytes):
    """Row tile: multiple of 8 (or full rows), fits VMEM, aims for >= _TARGET_STEPS steps."""
    if rows <= 8:
        return rows
    tr_budget = max(8, (max_block_bytes // bytes_per_row) // 8 * 8)
    tr_steps = _round_up(-(-rows // _TARGET_STEPS), 8)
    tr = max(8, min(tr_budget, tr_steps))
    return rows if tr >= rows else tr


def _ssp(x):
    # shifted softplus: softplus(x) - log(2), numerically stable form
    return jnp.maximum(x, 0.0) + jnp.log1p(jnp.exp(-jnp.abs(x))) - LOG2


def _rot_equiv_kernel(x_ref, g_ref, b_ref, o_ref):
    """Vector (l>0) path.  x_ref/o_ref: (tr, L); g_ref: (L, L) 0/1 block-diag (bf16);
    b_ref: (1, L) f32 lane-broadcast bias.  L % (C*M) == 0; rows are independent."""
    x = x_ref[...].astype(jnp.float32)                       # (tr, L)
    x2 = x * x
    g = g_ref[...]                                           # (L, L) bf16, entries 0/1
    # bf16 hi/lo split -> two bf16 matmuls with f32 accumulation: group sums with
    # ~2^-18 relative error, regardless of the backend's f32-matmul precision mode.
    hi = x2.astype(jnp.bfloat16)
    lo = (x2 - hi.astype(jnp.float32)).astype(jnp.bfloat16)
    gs = (jnp.dot(hi, g, preferred_element_type=jnp.float32)
          + jnp.dot(lo, g, preferred_element_type=jnp.float32))   # (tr, L): group sum at every lane
    sumsq = jnp.maximum(gs, EPS)                             # eps_l2_norm clamp
    inv_norm = lax.rsqrt(sumsq)
    norm = sumsq * inv_norm                                  # == sqrt(sumsq) up to rounding
    factor = _ssp(norm + b_ref[...]) * inv_norm              # bias broadcast over sublanes
    o_ref[...] = (x * factor).astype(o_ref.dtype)


def _ssp_kernel(x_ref, o_ref):
    """Scalar (l=0) path: plain elementwise shifted softplus (bias unused, as in PyTorch)."""
    o_ref[...] = _ssp(x_ref[...].astype(jnp.float32)).astype(o_ref.dtype)


def _scalar_path(x, max_block_bytes, vmem_limit):
    shape, dtype = x.shape, x.dtype
    total = x.size
    cols = _largest_divisor_leq(total, _SCALAR_COLS_MAX)   # exact factorization: no jnp.pad
    rows = total // cols
    x2 = x.reshape(rows, cols)                             # free row-major view
    tr = _pick_row_tile(rows, cols * jnp.dtype(dtype).itemsize, max_block_bytes)
    spec = pl.BlockSpec((tr, cols), lambda i: (i, 0))
    out = pl.pallas_call(
        _ssp_kernel,
        out_shape=jax.ShapeDtypeStruct((rows, cols), dtype),
        grid_spec=pltpu.PrefetchScalarGridSpec(
            num_scalar_prefetch=0,
            grid=(pl.cdiv(rows, tr),),
            in_specs=[spec],
            out_specs=spec,
        ),
        compiler_params=pltpu.CompilerParams(
            dimension_semantics=("parallel",),
            vmem_limit_bytes=vmem_limit,
        ),
    )(x2)
    return out.reshape(shape)


def rot_equiv_nonlin(x, bias):
    """x: (..., C, M) (PyTorch convention), bias: (C,).  Same shape/dtype out."""
    *lead, C, M = x.shape
    dtype = x.dtype
    max_block_bytes, vmem_limit = _vmem_budgets()

    if M == 1:
        # PyTorch forward returns nonlin(tensor) directly when 2l+1 == 1 (bias unused).
        return _scalar_path(x, max_block_bytes, vmem_limit)

    R = math.prod(lead) if lead else 1
    P = C * M
    # Lane width L = k*P with k | R: the reshape (..., C, M) -> (R//k, k*C*M) is a free
    # row-major view (no HBM transpose, no pad) and both the M-groups and the per-channel
    # bias repeat with a fixed lane period P.  k balances lane width (DMA granularity,
    # MXU cost of the group-sum matmul) against having enough rows for >= 4-8 grid steps.
    k_cap = max(1, min(_LANE_TARGET // P,
                       max(R // (8 * _TARGET_STEPS), -(-_LANE_FLOOR // P))))
    k = _largest_divisor_leq(R, k_cap)     # falls back to narrow lanes only if R has no divisor
    L = k * P
    rows = R // k

    x2 = x.reshape(rows, L)                # free view of the original layout

    # Tiny constant side inputs (resident blocks): block-diagonal group matrix + lane bias.
    lane = jnp.arange(L, dtype=jnp.int32)
    group = lane // M
    g_mat = (group[:, None] == group[None, :]).astype(jnp.bfloat16)          # (L, L)
    bias_lane = jnp.tile(jnp.repeat(bias.astype(jnp.float32), M), k).reshape(1, L)

    tr = _pick_row_tile(rows, L * jnp.dtype(dtype).itemsize, max_block_bytes)
    data_spec = pl.BlockSpec((tr, L), lambda i: (i, 0))
    out = pl.pallas_call(
        _rot_equiv_kernel,
        out_shape=jax.ShapeDtypeStruct((rows, L), dtype),
        grid_spec=pltpu.PrefetchScalarGridSpec(
            num_scalar_prefetch=0,
            grid=(pl.cdiv(rows, tr),),
            in_specs=[
                data_spec,
                pl.BlockSpec((L, L), lambda i: (0, 0)),   # G: constant block, stays resident
                pl.BlockSpec((1, L), lambda i: (0, 0)),   # lane-dense bias row
            ],
            out_specs=data_spec,
        ),
        compiler_params=pltpu.CompilerParams(
            dimension_semantics=("parallel",),
            vmem_limit_bytes=vmem_limit,
        ),
    )(x2, g_mat, bias_lane)
    return out.reshape(x.shape)            # free view back to the original layout


if __name__ == "__main__":
    key = jax.random.PRNGKey(0)
    kx, kb, k0, k1, k2 = jax.random.split(key, 5)

    def ref_vector(x, b):
        norm = jnp.sqrt(jnp.maximum(jnp.sum(x * x, axis=-1), EPS))
        return x * ((_ssp(norm + b) / norm)[..., None])

    # l=1 features: (batch, points, channels, 2l+1)
    B, N, C, M = 2, 128, 4, 3
    x = jax.random.normal(kx, (B, N, C, M), dtype=jnp.float32)
    bias = 0.1 * jax.random.normal(kb, (C,), dtype=jnp.float32)
    out = jax.block_until_ready(rot_equiv_nonlin(x, bias))
    assert out.shape == x.shape and out.dtype == x.dtype
    assert jnp.allclose(out, ref_vector(x, bias), atol=1e-5, rtol=1e-5)

    # scalar (l=0) branch: last dim == 1 -> plain ssp, bias unused (matches PyTorch forward)
    x0 = jax.random.normal(k0, (B, N, C, 1), dtype=jnp.float32)
    out0 = jax.block_until_ready(rot_equiv_nonlin(x0, bias))
    assert out0.shape == x0.shape and out0.dtype == x0.dtype
    assert jnp.allclose(out0, _ssp(x0), atol=1e-5, rtol=1e-5)

    # larger leading dims: multi-step grid, no padding / extra HBM passes
    x1 = jax.random.normal(k1, (3, 1000, C, M), dtype=jnp.float32)
    out1 = jax.block_until_ready(rot_equiv_nonlin(x1, bias))
    assert jnp.allclose(out1, ref_vector(x1, bias), atol=1e-5, rtol=1e-5)

    # higher-order rep (2l+1 = 5) with awkward prime-ish dims: exercises the ragged
    # last row-block (OOB rows dropped) and a different bias/group lane period
    C2, M2 = 3, 5
    x2_ = jax.random.normal(k2, (7, 11, C2, M2), dtype=jnp.float32)
    bias2 = 0.2 * jax.random.normal(kb, (C2,), dtype=jnp.float32)
    out2 = jax.block_until_ready(rot_equiv_nonlin(x2_, bias2))
    assert jnp.allclose(out2, ref_vector(x2_, bias2), atol=1e-5, rtol=1e-5)

    print("KERNEL_OK")
</pallas_src>

<mosaic_0001>
module attributes {stable_mosaic.version = 11 : i64} {
  func.func @_rot_equiv_kernel(%arg0: i32, %arg1: memref<8x96xf32, #tpu.memory_space<vmem>>, %arg2: memref<96x96xbf16, #tpu.memory_space<vmem>>, %arg3: memref<1x96xf32, #tpu.memory_space<vmem>>, %arg4: memref<8x96xf32, #tpu.memory_space<vmem>>) attributes {dimension_semantics = [#tpu.dimension_semantics<parallel>], iteration_bounds = array<i64: 4>, scalar_prefetch = 0 : i64, scratch_operands = 0 : i64, tpu.core_type = #tpu.core_type<tc>, window_params = [{transform_indices = @transform_0, window_bounds = array<i64: 8, 96>}, {pipeline_mode = #tpu.pipeline_mode<synchronous>, transform_indices = @transform_1, window_bounds = array<i64: 96, 96>}, {pipeline_mode = #tpu.pipeline_mode<synchronous>, transform_indices = @transform_2, window_bounds = array<i64: 1, 96>}, {transform_indices = @transform_3, window_bounds = array<i64: 8, 96>}]} {
    %c0 = arith.constant 0 : index
    %c0_0 = arith.constant 0 : index
    %0 = vector.load %arg1[%c0, %c0_0] : memref<8x96xf32, #tpu.memory_space<vmem>>, vector<8x96xf32>
    %1 = arith.mulf %0, %0 : vector<8x96xf32>
    %c0_1 = arith.constant 0 : index
    %c0_2 = arith.constant 0 : index
    %2 = vector.load %arg2[%c0_1, %c0_2] : memref<96x96xbf16, #tpu.memory_space<vmem>>, vector<96x96xbf16>
    %3 = arith.truncf %1 : vector<8x96xf32> to vector<8x96xbf16>
    %4 = arith.extf %3 : vector<8x96xbf16> to vector<8x96xf32>
    %5 = arith.subf %1, %4 : vector<8x96xf32>
    %6 = arith.truncf %5 : vector<8x96xf32> to vector<8x96xbf16>
    %cst = arith.constant dense<0.000000e+00> : vector<8x96xf32>
    %7 = tpu.matmul %3, %2, %cst {dimension_numbers = #tpu.dot_dimension_numbers<[1], [0], [0], [1], [0, 0, 1, 1], [], []>} : vector<8x96xbf16>, vector<96x96xbf16>, vector<8x96xf32> -> vector<8x96xf32>
    %cst_3 = arith.constant dense<0.000000e+00> : vector<8x96xf32>
    %8 = tpu.matmul %6, %2, %cst_3 {dimension_numbers = #tpu.dot_dimension_numbers<[1], [0], [0], [1], [0, 0, 1, 1], [], []>} : vector<8x96xbf16>, vector<96x96xbf16>, vector<8x96xf32> -> vector<8x96xf32>
    %9 = arith.addf %7, %8 : vector<8x96xf32>
    %cst_4 = arith.constant 9.99999993E-9 : f32
    %10 = vector.broadcast %cst_4 : f32 to vector<8x96xf32>
    %11 = arith.maximumf %9, %10 : vector<8x96xf32>
    %12 = math.rsqrt %11 : vector<8x96xf32>
    %13 = arith.mulf %11, %12 : vector<8x96xf32>
    %c0_5 = arith.constant 0 : index
    %c0_6 = arith.constant 0 : index
    %14 = vector.load %arg3[%c0_5, %c0_6] : memref<1x96xf32, #tpu.memory_space<vmem>>, vector<1x96xf32>
    %15 = vector.broadcast %14 : vector<1x96xf32> to vector<8x96xf32>
    %16 = arith.addf %13, %15 : vector<8x96xf32>
    %cst_7 = arith.constant 0.000000e+00 : f32
    %17 = vector.broadcast %cst_7 : f32 to vector<8x96xf32>
    %18 = arith.maximumf %16, %17 : vector<8x96xf32>
    %19 = math.absf %16 : vector<8x96xf32>
    %cst_8 = arith.constant 0.000000e+00 : f32
    %20 = vector.broadcast %cst_8 : f32 to vector<8x96xf32>
    %21 = arith.subf %20, %19 : vector<8x96xf32>
    %22 = math.exp %21 : vector<8x96xf32>
    %23 = math.log1p %22 : vector<8x96xf32>
    %24 = arith.addf %18, %23 : vector<8x96xf32>
    %cst_9 = arith.constant 0.693147182 : f32
    %25 = vector.broadcast %cst_9 : f32 to vector<8x96xf32>
    %26 = arith.subf %24, %25 : vector<8x96xf32>
    %27 = arith.mulf %26, %12 : vector<8x96xf32>
    %28 = arith.mulf %0, %27 : vector<8x96xf32>
    %c0_10 = arith.constant 0 : index
    %c0_11 = arith.constant 0 : index
    %29 = vector.load %arg4[%c0_10, %c0_11] : memref<8x96xf32, #tpu.memory_space<vmem>>, vector<8x96xf32>
    tpu.vector_store %arg4[%c0_10, %c0_11], %28 {strides = array<i32>} : memref<8x96xf32, #tpu.memory_space<vmem>>, vector<8x96xf32>,
    return
  }
  func.func @transform_0(%arg0: i32) -> (i32, i32) {
    %c0_i32 = arith.constant 0 : i32
    %c0_i32_0 = arith.constant 0 : i32
    return %arg0, %c0_i32 : i32, i32
  }
  func.func @transform_1(%arg0: i32) -> (i32, i32) {
    %c0_i32 = arith.constant 0 : i32
    %c0_i32_0 = arith.constant 0 : i32
    %c0_i32_1 = arith.constant 0 : i32
    return %c0_i32, %c0_i32_0 : i32, i32
  }
  func.func @transform_2(%arg0: i32) -> (i32, i32) {
    %c0_i32 = arith.constant 0 : i32
    %c0_i32_0 = arith.constant 0 : i32
    %c0_i32_1 = arith.constant 0 : i32
    return %c0_i32, %c0_i32_0 : i32, i32
  }
  func.func @transform_3(%arg0: i32) -> (i32, i32) {
    %c0_i32 = arith.constant 0 : i32
    %c0_i32_0 = arith.constant 0 : i32
    return %arg0, %c0_i32 : i32, i32
  }
}

</mosaic_0001>

<llo_original>
// kernel: tpu_custom_call.1
$region0: #{tpu_custom_call.1}
  #allocation0 [shape = 'u32[]', space=smem, size = 0x4, offset = 0x4, fixed_abs, tag = 'smem constant byte address 0x4 - core index']
  #allocation1 [shape = 'u32[72,128]{1,0:T(1,128)}', space=vmem, size = 0x9000, scoped, tag = 'internal scratch']
  %s0 = inlined_call_operand.hbm [shape: f32[32,96], index: 0, kind: input, shape index: {}]
  %s1 = inlined_call_operand.hbm [shape: bf16[96,96], index: 1, kind: input, shape index: {}]
  %s2 = inlined_call_operand.vmem [shape: f32[1,96], index: 2, kind: input, shape index: {}]
  %s3 = inlined_call_operand.hbm [shape: f32[32,96], index: 3, kind: output, shape index: {}]
  %s4 = sld [smem:[#allocation0]]
  $region53: #{tpu_custom_call.1} parent=0
    _
  %s6 = ssub.s32 1, %s4
  %s7 = scalar_select 0, %s6, %s4
  $region1: #{tpu_custom_call.1} parent=0
    #allocation2 [shape = 'u8[8192]{0}', space=vmem, size = 0x2000, scoped, tag = 'input window, operand 0']
    #allocation3 [shape = 's32[2]{0}', space=sflag, size = 0x8, scoped, tag = 'scoped memory for tpu_custom_call.1']
    #allocation4 [shape = 's32[2]{0}', space=sflag, size = 0x8, scoped, tag = 'scoped memory for tpu_custom_call.1']
    #allocation5 [shape = 'u8[24576]{0}', space=vmem, size = 0x6000, scoped, tag = 'input window, operand 1, single buffered']
    #allocation6 [shape = 's32[1]{0}', space=sflag, size = 0x4, scoped, tag = 'scoped memory for tpu_custom_call.1']
    #allocation7 [shape = 'u8[8192]{0}', space=vmem, size = 0x2000, scoped, tag = 'output window, operand 0']
    %8 = vsyncpa [#allocation3], 0
    %s9 = scalar_lea.sflag [#allocation3], 1
    %10 = vsyncpa %s9, 0
    %11 = vsyncpa [#allocation6], 0
    %12 = vsyncpa [#allocation4], 0
    %s13 = scalar_lea.sflag [#allocation4], 1
    %14 = vsyncpa %s13, 0
    loop: start=0, step=1, limit=6
    $region2: #{tpu_custom_call.1} parent=1 // loop_pre_header
      _
    $region3: #{tpu_custom_call.1} parent=1 // loop_header
      %s16 = sphi 0, %s20
      %p17 = scmp.ge.s32.totalorder %s16, 6
      %s26 = sphi 0, %s28
      %s29 = sphi 0, %s26
      %s30 = sphi 0, %s29
      %s46 = sphi 0, %s30
      %s50 = sphi 0, %s50
      %s52 = sphi 0, %s50
      %s53 = sphi 0, %s52
      %s67 = sphi 0, %s53
      %s71 = sphi 0, %s71
      %s73 = sphi 0, %s71
      %s74 = sphi 0, %s73
      %s88 = sphi 0, %s74
      %s94 = sphi 0, %s96
      %s97 = sphi 0, %s94
      %s98 = sphi 0, %s97
      %s114 = sphi 0, %s98
    $region4: #{tpu_custom_call.1} parent=1 // loop_header_branch
      %19 = sbr.rel (%p17) target = $region8
    $region5: #{tpu_custom_call.1} parent=1 // loop_body
      %s21 = ssub.s32 %s16, 1
      %s22 = ssub.s32 %s16, 2
      %s23 = sadd.s32 %s16, 1
      %s24 = ssub.s32 %s16, %s23
      %p25 = scmp.eq.s32.totalorder %s24, 0
      %s27 = sadd.s32 %s26, 1
      %s28 = scalar_select %p25, %s26, %s27
      %p31 = pneg %p25
      %p32 = scmp.eq.s32.totalorder %s16, 3
      %p33 = por %p31, %p32
      %p34 = scmp.ne.s32.totalorder %s26, %s29
      %p35 = scmp.eq.s32.totalorder %s16, 0
      %p36 = por %p34, %p35
      %p37 = scmp.ne.s32.totalorder %s26, %s29
      %p38 = scmp.eq.s32.totalorder %s21, 3
      %p39 = por %p37, %p38
      %p40 = scmp.ne.s32.totalorder %s29, %s30
      %p41 = scmp.eq.s32.totalorder %s21, 0
      %p42 = por %p40, %p41
      %p43 = scmp.ne.s32.totalorder %s29, %s30
      %p44 = scmp.eq.s32.totalorder %s22, 3
      %p45 = por %p43, %p44
      %p47 = scmp.ne.s32.totalorder %s30, %s46
      %p48 = scmp.eq.s32.totalorder %s22, 0
      %p49 = por %p47, %p48
      %s51 = sadd.s32 %s50, 1
      %p54 = scmp.eq.s32.totalorder %s16, 3
      %p55 = scmp.ne.s32.totalorder %s50, %s52
      %p56 = scmp.eq.s32.totalorder %s16, 0
      %p57 = por %p55, %p56
      %p58 = scmp.ne.s32.totalorder %s50, %s52
      %p59 = scmp.eq.s32.totalorder %s21, 3
      %p60 = por %p58, %p59
      %p61 = scmp.ne.s32.totalorder %s52, %s53
      %p62 = scmp.eq.s32.totalorder %s21, 0
      %p63 = por %p61, %p62
      %p64 = scmp.ne.s32.totalorder %s52, %s53
      %p65 = scmp.eq.s32.totalorder %s22, 3
      %p66 = por %p64, %p65
      %p68 = scmp.ne.s32.totalorder %s53, %s67
      %p69 = scmp.eq.s32.totalorder %s22, 0
      %p70 = por %p68, %p69
      %s72 = sadd.s32 %s71, 1
      %p75 = scmp.eq.s32.totalorder %s16, 3
      %p76 = scmp.ne.s32.totalorder %s71, %s73
      %p77 = scmp.eq.s32.totalorder %s16, 0
      %p78 = por %p76, %p77
      %p79 = scmp.ne.s32.totalorder %s71, %s73
      %p80 = scmp.eq.s32.totalorder %s21, 3
      %p81 = por %p79, %p80
      %p82 = scmp.ne.s32.totalorder %s73, %s74
      %p83 = scmp.eq.s32.totalorder %s21, 0
      %p84 = por %p82, %p83
      %p85 = scmp.ne.s32.totalorder %s73, %s74
      %p86 = scmp.eq.s32.totalorder %s22, 3
      %p87 = por %p85, %p86
      %p89 = scmp.ne.s32.totalorder %s74, %s88
      %p90 = scmp.eq.s32.totalorder %s22, 0
      %p91 = por %p89, %p90
      %s92 = ssub.s32 %s16, %s23
      %p93 = scmp.eq.s32.totalorder %s92, 0
      %s95 = sadd.s32 %s94, 1
      %s96 = scalar_select %p93, %s94, %s95
      %p99 = pneg %p93
      %p100 = scmp.eq.s32.totalorder %s16, 3
      %p101 = por %p99, %p100
      %p102 = scmp.ne.s32.totalorder %s94, %s97
      %p103 = scmp.eq.s32.totalorder %s16, 0
      %p104 = por %p102, %p103
      %p105 = scmp.ne.s32.totalorder %s94, %s97
      %p106 = scmp.eq.s32.totalorder %s21, 3
      %p107 = por %p105, %p106
      %p108 = scmp.ne.s32.totalorder %s97, %s98
      %p109 = scmp.eq.s32.totalorder %s21, 0
      %p110 = por %p108, %p109
      %p111 = scmp.ne.s32.totalorder %s97, %s98
      %p112 = scmp.eq.s32.totalorder %s22, 3
      %p113 = por %p111, %p112
      %p115 = scmp.ne.s32.totalorder %s98, %s114
      %p116 = scmp.eq.s32.totalorder %s22, 0
      %p117 = por %p115, %p116
      %p118 = scmp.le.s32.totalorder 1, %s16
      %p119 = scmp.lt.s32.totalorder %s16, 5
      %p120 = pnand %p118, %p119
      %p121 = pneg %p120
      // Predicated region
      $region9: #{tpu_custom_call.1} parent=5 // pred_check
        _
      $region10: #{tpu_custom_call.1} parent=5 // pred_check_branch
        %123 = sbr.rel (%p120) target = $region12
      $region11: #{tpu_custom_call.1} parent=5 // pred_region
        %s124 = ssub.s32 %s16, 1
        // Predicated region
        $region13: #{tpu_custom_call.1} parent=11 // pred_check
          %p125 = pneg %p63
        $region14: #{tpu_custom_call.1} parent=11 // pred_check_branch
          %127 = sbr.rel (%p125) target = $region16
        $region15: #{tpu_custom_call.1} parent=11 // pred_region
          %129 = vsyncadd [#allocation6], 0
          %s130 = sshll.u32 %s1, 4
          %s131 = int_to_ptr.hbm [resolvable:$true] %s130
          %s132 = sshll.u32 [#allocation5], 4
          %s133 = int_to_ptr.vmem [resolvable:$true] %s132
          %138 = dma.hbm_to_vmem [thread:$0]  %s131, 768, %s133, [#allocation6], 64, 64, 4
        $region16: #{tpu_custom_call.1} parent=11 // pred_fallthru
          _
        // Predicated region
        $region17: #{tpu_custom_call.1} parent=11 // pred_check
          %p139 = pneg %p84
        $region18: #{tpu_custom_call.1} parent=11 // pred_check_branch
          %141 = sbr.rel (%p139) target = $region20
        $region19: #{tpu_custom_call.1} parent=11 // pred_region
          _
        $region20: #{tpu_custom_call.1} parent=11 // pred_fallthru
          _
      $region12: #{tpu_custom_call.1} parent=5 // pred_fallthru
        _
      %p142 = scmp.lt.s32.totalorder %s16, 4
      // Predicated region
      $region21: #{tpu_custom_call.1} parent=5 // pred_check
        %p143 = pneg %p142
      $region22: #{tpu_custom_call.1} parent=5 // pred_check_branch
        %145 = sbr.rel (%p143) target = $region24
      $region23: #{tpu_custom_call.1} parent=5 // pred_region
        // Predicated region
        $region25: #{tpu_custom_call.1} parent=23 // pred_check
          %p146 = pneg %p36
        $region26: #{tpu_custom_call.1} parent=23 // pred_check_branch
          %148 = sbr.rel (%p146) target = $region28
        $region27: #{tpu_custom_call.1} parent=23 // pred_region
          %s149 = sand.u32 %s26, 1
          %s150 = scalar_lea.sflag [#allocation3], %s149
          %s151 = sand.u32 %s26, 1
          %s152 = smul.addr %s151, 8
          %s153 = scalar_lea.vmem [#allocation2], %s152
          %155 = vsyncadd %s150, 0
          %s156 = smul.addr %s16, 8
          %s157 = scalar_lea.hbm %s0, %s156
          %s159 = sshll.u32 %s157, 4
          %s160 = int_to_ptr.hbm [resolvable:$true] %s159
          %s161 = sshll.u32 %s153, 4
          %s162 = int_to_ptr.vmem [resolvable:$true] %s161
          %164 = dma.hbm_to_vmem [thread:$0]  %s160, 128, %s162, %s150
        $region28: #{tpu_custom_call.1} parent=23 // pred_fallthru
          _
      $region24: #{tpu_custom_call.1} parent=5 // pred_fallthru
        _
      %p165 = scmp.le.s32.totalorder 1, %s16
      %p166 = scmp.lt.s32.totalorder %s16, 5
      %p167 = pnand %p165, %p166
      %p168 = pneg %p167
      // Predicated region
      $region29: #{tpu_custom_call.1} parent=5 // pred_check
        _
      $region30: #{tpu_custom_call.1} parent=5 // pred_check_branch
        %170 = sbr.rel (%p167) target = $region32
      $region31: #{tpu_custom_call.1} parent=5 // pred_region
        %s171 = ssub.s32 %s16, 1
        %s172 = sand.u32 %s29, 1
        %s173 = scalar_lea.sflag [#allocation3], %s172
        %s174 = sand.u32 %s29, 1
        %s175 = smul.addr %s174, 8
        %s176 = scalar_lea.vmem [#allocation2], %s175
        // Predicated region
        $region33: #{tpu_custom_call.1} parent=31 // pred_check
          %p177 = pneg %p42
        $region34: #{tpu_custom_call.1} parent=31 // pred_check_branch
          %179 = sbr.rel (%p177) target = $region36
        $region35: #{tpu_custom_call.1} parent=31 // pred_region
          %181 = dma.done %s173, 128
        $region36: #{tpu_custom_call.1} parent=31 // pred_fallthru
          _
        // Predicated region
        $region37: #{tpu_custom_call.1} parent=31 // pred_check
          %p182 = pneg %p63
        $region38: #{tpu_custom_call.1} parent=31 // pred_check_branch
          %184 = sbr.rel (%p182) target = $region40
        $region39: #{tpu_custom_call.1} parent=31 // pred_region
          %186 = dma.done [#allocation6], 768
        $region40: #{tpu_custom_call.1} parent=31 // pred_fallthru
          _
        %s187 = sand.u32 %s29, 1
        %s188 = scalar_lea.sflag [#allocation3], %s187
        %s189 = sand.u32 %s29, 1
        %s190 = smul.addr %s189, 8
        %s191 = scalar_lea.vmem [#allocation2], %s190
        %p192 = pneg %p42
        %p193 = pneg %p39
        %p194 = pneg %p63
        %p195 = pneg %p60
        %p196 = pneg %p84
        %p197 = pneg %p81
        %p198 = pneg %p110
        %p199 = pneg %p107
        %s200 = sand.u32 %s97, 1
        %s201 = scalar_lea.sflag [#allocation4], %s200
        %s202 = sand.u32 %s97, 1
        %s203 = smul.addr %s202, 8
        %s204 = scalar_lea.vmem [#allocation7], %s203
        %v206 = vld [vmem:[%s176] sm:$0xff]
        %v207 = vmul.f32 %v206, %v206
        %v208 = vld [vmem:[#allocation5] sm:$0xf]
        %v209 = vld [vmem:[#allocation5 + $0x4] sm:$0xf]
        %v210 = vld [vmem:[#allocation5 + $0x8] sm:$0xf]
        %v211 = vld [vmem:[#allocation5 + $0xc] sm:$0xf]
        %v212 = vld [vmem:[#allocation5 + $0x10] sm:$0xf]
        %v213 = vld [vmem:[#allocation5 + $0x14] sm:$0xf]
        %v214 = vld [vmem:[#allocation5 + $0x18] sm:$0xf]
        %v215 = vld [vmem:[#allocation5 + $0x1c] sm:$0xf]
        %v216 = vld [vmem:[#allocation5 + $0x20] sm:$0xf]
        %v217 = vld [vmem:[#allocation5 + $0x24] sm:$0xf]
        %v218 = vld [vmem:[#allocation5 + $0x28] sm:$0xf]
        %v219 = vld [vmem:[#allocation5 + $0x2c] sm:$0xf]
        %v220 = vpack.c.bf16 %v207, %v207
        %v221 = vunpack.c.l.bf16 %v220
        %v222 = vsub.f32 %v207, %v221
        %v223 = vpack.c.bf16 %v222, %v222
        %v236 = vunpack.c.l.b16 %v208
        %v237 = vunpack.c.l.b16 %v209
        %v238 = vunpack.c.l.b16 %v210
        %v239 = vunpack.c.l.b16 %v211
        %v240 = vunpack.c.l.b16 %v212
        %v241 = vunpack.c.l.b16 %v213
        %v242 = vunpack.c.l.b16 %v214
        %v243 = vunpack.c.l.b16 %v215
        %v244 = vunpack.c.l.b16 %v216
        %v245 = vunpack.c.l.b16 %v217
        %v246 = vunpack.c.l.b16 %v218
        %v247 = vunpack.c.l.b16 %v219
        %v248 = vpack.c.b16 %v237, %v236
        %v249 = vpack.c.b16 %v239, %v238
        %v250 = vpack.c.b16 %v241, %v240
        %v251 = vpack.c.b16 %v243, %v242
        %v252 = vpack.c.b16 %v245, %v244
        %v253 = vpack.c.b16 %v247, %v246
        %vm260 = vcmask 785408
        %v262 = vsel %vm260, %v223, 0
        %264 = vmatpush.bf16.msra.mxu0 0
        %265 = vmatpush.bf16.msra.mxu0 0
        %266 = vmatpush.bf16.msra.mxu0 %v253
        %267 = vmatpush.bf16.msra.mxu0 %v252
        %268 = vmatpush.bf16.msra.mxu0 %v251
        %269 = vmatpush.bf16.msra.mxu0 %v250
        %270 = vmatpush.bf16.msra.mxu0 %v249
        %271 = vmatpush.bf16.msra.mxu0 %v248
        %272 = vmatmul.bf16.gmra.mxu0 %v262
        %v273 = vpop.f32.mrf.mxu0
        %v274 = vadd.f32 0.0, %v273
        %v275 = vpop.f32.mrf.mxu0
        %276 = vdwg.mxu0
        %v278 = vsel %vm260, %v220, 0
        %280 = vmatpush.bf16.msra.mxu0 0
        %281 = vmatpush.bf16.msra.mxu0 0
        %282 = vmatpush.bf16.msra.mxu0 %v253
        %283 = vmatpush.bf16.msra.mxu0 %v252
        %284 = vmatpush.bf16.msra.mxu0 %v251
        %285 = vmatpush.bf16.msra.mxu0 %v250
        %286 = vmatpush.bf16.msra.mxu0 %v249
        %287 = vmatpush.bf16.msra.mxu0 %v248
        %288 = vmatmul.bf16.gmra.mxu0 %v278
        %v289 = vpop.f32.mrf.mxu0
        %v290 = vadd.f32 %v274, %v289
        %v291 = vpop.f32.mrf.mxu0
        %292 = vdwg.mxu0
        %v293 = vmax.f32 %v290, 1e-08
        %v294 = vrsqrt.pop %v293
        %v295 = vmul.f32 %v294, %v293
        %v296 = vmul.f32 %v295, %v294
        %v297 = vmul.f32 0.5, %v296
        %v298 = vsub.f32 1.5, %v297
        %v299 = vmul.f32 %v294, %v298
        %vm300 = vweird.f32 %v293
        %vm301 = vweird.f32 %v294
        %vm302 = vmor %vm300, %vm301
        %v303 = vsel %vm302, %v294, %v299
        %v304 = vmul.f32 %v293, %v303
        %v305 = vld [vmem:[%s2] sm:$0x1]
        %v307 = vperm.slane %v305, 0
        %v309 = vadd.f32 %v304, %v307
        %v310 = vmax.f32 %v309, 0.0
        %v311 = vand.u32 2147483647, %v309
        %v312 = vsub.f32 0.0, %v311
        %v313 = vmul.f32 %v312, 1.442695
        %v314 = vpow.pop %v313
        %v315 = vadd.f32 %v314, 1.0
        %v316 = vlog2.pop %v315
        %v317 = vmul.f32 %v316, 0.6931472
        %v318 = vmul.f32 -0.5, %v314
        %v319 = vadd.f32 %v318, 1.0
        %v320 = vmul.f32 %v319, %v314
        %v321 = vand.u32 2147483647, %v314
        %vm322 = vcmp.lt.f32.partialorder %v321, 0.0004427343
        %v323 = vsel %vm322, %v320, %v317
        %v324 = vadd.f32 %v310, %v323
        %v325 = vsub.f32 %v324, 0.6931472
        %v326 = vmul.f32 %v325, %v303
        %v327 = vmul.f32 %v206, %v326
        %328 = vst.msk [vmem:[%s204] sm:$0xff] %vm260, %v327
        %s329 = sand.u32 %s97, 1
        %s330 = scalar_lea.sflag [#allocation4], %s329
        %s331 = sand.u32 %s97, 1
        %s332 = smul.addr %s331, 8
        %s333 = scalar_lea.vmem [#allocation7], %s332
        // Predicated region
        $region41: #{tpu_custom_call.1} parent=31 // pred_check
          %p334 = pneg %p107
        $region42: #{tpu_custom_call.1} parent=31 // pred_check_branch
          %336 = sbr.rel (%p334) target = $region44
        $region43: #{tpu_custom_call.1} parent=31 // pred_region
          %338 = vsyncadd %s330, 0
          %s339 = smul.addr %s21, 8
          %s340 = scalar_lea.hbm %s3, %s339
          %s342 = sshll.u32 %s333, 4
          %s343 = int_to_ptr.vmem [resolvable:$true] %s342
          %s344 = sshll.u32 %s340, 4
          %s345 = int_to_ptr.hbm [resolvable:$true] %s344
          %347 = dma.vmem_to_hbm [thread:$0]  %s343, 128, %s345, %s330
        $region44: #{tpu_custom_call.1} parent=31 // pred_fallthru
          _
      $region32: #{tpu_custom_call.1} parent=5 // pred_fallthru
        _
      %p348 = scmp.le.s32.totalorder 2, %s16
      // Predicated region
      $region45: #{tpu_custom_call.1} parent=5 // pred_check
        %p349 = pneg %p348
      $region46: #{tpu_custom_call.1} parent=5 // pred_check_branch
        %351 = sbr.rel (%p349) target = $region48
      $region47: #{tpu_custom_call.1} parent=5 // pred_region
        %s352 = ssub.s32 %s16, 2
        // Predicated region
        $region49: #{tpu_custom_call.1} parent=47 // pred_check
          %p353 = pneg %p113
        $region50: #{tpu_custom_call.1} parent=47 // pred_check_branch
          %355 = sbr.rel (%p353) target = $region52
        $region51: #{tpu_custom_call.1} parent=47 // pred_region
          %s356 = sand.u32 %s98, 1
          %s357 = scalar_lea.sflag [#allocation4], %s356
          %s358 = sand.u32 %s98, 1
          %s359 = smul.addr %s358, 8
          %s360 = scalar_lea.vmem [#allocation7], %s359
          %362 = dma.done %s357, 128
        $region52: #{tpu_custom_call.1} parent=47 // pred_fallthru
          _
      $region48: #{tpu_custom_call.1} parent=5 // pred_fallthru
        _
    $region6: #{tpu_custom_call.1} parent=1 // loop_footer
      %s20 = sadd.s32 1, %s16
    $region7: #{tpu_custom_call.1} parent=1 // loop_footer_branch
      %15 = sbr.rel target = $region3
    $region8: #{tpu_custom_call.1} parent=1 // loop_exit
      _
    %363 = vsyncpa [#allocation3], 1
    %s364 = scalar_lea.sflag [#allocation3], 1
    %365 = vsyncpa %s364, 1
    %366 = vsyncpa [#allocation6], 1
    %367 = vsyncpa [#allocation4], 1
    %s368 = scalar_lea.sflag [#allocation4], 1
    %369 = vsyncpa %s368, 1

</llo_original>
